<compile_context>
chip_gen: v6e
topology: v6e:2x2x1
jax: 0.10.0
libtpu: 0.0.40
codegen_flags: <defaults>
</compile_context>

<pallas_src>
import functools

import numpy as np
import jax
import jax.numpy as jnp
from jax.experimental import pallas as pl
from jax.experimental.pallas import tpu as pltpu


def _round_up(v, m):
    return (v + m - 1) // m * m


def _physical_vmem_bytes():
    try:
        cap = getattr(pltpu.get_tpu_info(), "vmem_capacity_bytes", None)
        if cap:
            return int(cap)
    except Exception:
        pass
    return 128 * 2 ** 20


# ---------------------------------------------------------------------------
# Fused Pallas kernel: whole TCN block for one batch element.
# ---------------------------------------------------------------------------
def _tcn_fused_kernel(x_ref, b_ref, *rest, n_convs, has_out_conv, c_out, halo):
    scr_ref = rest[-1]              # (c_work, halo + T + halo) f32 halo buffer
    o_ref = rest[-2]                # (1, c_out, T) f32
    w_refs = rest[:-2]              # n_convs x (3, oc_p, ic) bf16 (+ w_out)

    f32, bf16 = jnp.float32, jnp.bfloat16
    x = x_ref[0]                    # (c_in, T) f32
    t = x.shape[-1]
    oc_p = w_refs[0].shape[1]
    H = halo

    def leaky(v):                   # LeakyReLU(0.2): mul + max, no select
        return jnp.maximum(v, 0.2 * v)

    # Zero the halo columns once per grid step.  The centre is overwritten by
    # every layer while the halos stay zero, so the +/-d shifted reads below
    # implement ConstantPad1d((d, d), 0.) exactly -- including when d >= T
    # (the shifted window then lies entirely inside a zero halo).
    zhalo = jnp.zeros((scr_ref.shape[0], H), f32)
    scr_ref[:, :H] = zhalo
    scr_ref[:, H + t:] = zhalo

    # Residual path: fused 1x1 projection of x (single MXU matmul) or identity.
    if has_out_conv:
        acc = jnp.dot(w_refs[n_convs][...], x.astype(bf16),
                      preferred_element_type=f32) + b_ref[n_convs]
    else:
        c_in = x.shape[0]
        if oc_p > c_in:
            acc = jnp.concatenate(
                [x, jnp.zeros((oc_p - c_in, t), f32)], axis=0)
        else:
            acc = x

    y = x
    for i in range(n_convs):
        d = 1 << i
        if i > 0:
            y = leaky(y)            # fused activation of the previous layer
        c = y.shape[0]
        scr_ref[:c, H:H + t] = y    # write centre of the halo buffer
        yb = y.astype(bf16)
        w = w_refs[i]               # (3, oc_p, c) bf16 tap stack
        # out[t] = W0 @ y[t-d] + W1 @ y[t] + W2 @ y[t+d]   (zeros outside [0,T))
        out = jnp.dot(w[1], yb, preferred_element_type=f32)
        out = out + jnp.dot(w[0], scr_ref[:c, H - d:H - d + t].astype(bf16),
                            preferred_element_type=f32)
        out = out + jnp.dot(w[2], scr_ref[:c, H + d:H + d + t].astype(bf16),
                            preferred_element_type=f32)
        out = out + b_ref[i]
        y = out
        acc = acc + out             # residual sums EVERY layer output (spec)

    o_ref[0] = leaky(acc)[:c_out, :]


# ---------------------------------------------------------------------------
# Wrapper: BlockSpecs, scratch, pallas_call (no HBM pad / slice passes)
# ---------------------------------------------------------------------------
def tcn_block_forward(x, blk):
    n, c_in, t = x.shape
    x = x.astype(jnp.float32)
    halo = 1 << (blk.n_convs - 1)                 # largest dilation
    c_work = max(c_in, blk.c_out_p)

    inputs = [x, blk.b_all] + list(blk.w_taps)
    in_specs = [
        pl.BlockSpec((1, c_in, t), lambda i: (i, 0, 0)),
        pl.BlockSpec(blk.b_all.shape, lambda i: (0, 0, 0)),
    ]
    in_specs += [pl.BlockSpec(w.shape, lambda i: (0, 0, 0)) for w in blk.w_taps]
    if blk.has_out_conv:
        inputs.append(blk.w_out_p)
        in_specs.append(pl.BlockSpec(blk.w_out_p.shape, lambda i: (0, 0)))

    kernel = functools.partial(
        _tcn_fused_kernel, n_convs=blk.n_convs, has_out_conv=blk.has_out_conv,
        c_out=blk.out_channels, halo=halo)

    # Per-grid-step VMEM estimate: double-buffered I/O blocks + resident bf16
    # weights (double-buffered) + biases + halo scratch + live f32 temporaries.
    est = 2 * c_in * t * 4 + 2 * blk.out_channels * t * 4
    est += 2 * sum(2 * int(np.prod(w.shape)) for w in blk.w_taps)
    est += 2 * 4 * int(np.prod(blk.b_all.shape))
    if blk.has_out_conv:
        est += 2 * 2 * int(np.prod(blk.w_out_p.shape))
    est += 4 * c_work * (t + 2 * halo)
    est += 8 * blk.c_out_p * t * 4
    cap = int(0.85 * _physical_vmem_bytes())      # headroom on every chip gen
    vmem_limit = int(min(cap, max(32 * 2 ** 20, 2 * est)))

    return pl.pallas_call(
        kernel,
        out_shape=jax.ShapeDtypeStruct((n, blk.out_channels, t), jnp.float32),
        grid_spec=pltpu.PrefetchScalarGridSpec(
            num_scalar_prefetch=0,
            grid=(n,),
            in_specs=in_specs,
            out_specs=pl.BlockSpec((1, blk.out_channels, t),
                                   lambda i: (i, 0, 0)),
            scratch_shapes=[pltpu.VMEM((c_work, t + 2 * halo), jnp.float32)],
        ),
        compiler_params=pltpu.CompilerParams(
            dimension_semantics=("parallel",),
            vmem_limit_bytes=vmem_limit,
        ),
    )(*inputs)


# ---------------------------------------------------------------------------
# TCNBlock: parameters (raw + fused bf16 layout) + forward
# ---------------------------------------------------------------------------
class TCNBlockPallas:
    def __init__(self, in_channels, out_channels, receptive_field_size, key):
        self.in_channels = in_channels
        self.out_channels = out_channels
        self.n_convs = int(np.log2(receptive_field_size)) + 1
        self.has_out_conv = in_channels != out_channels
        self.c_out_p = _round_up(out_channels, 8)

        keys = jax.random.split(key, self.n_convs + 1)
        self.conv_w, self.conv_b = [], []           # raw f32, PyTorch layout
        for i in range(self.n_convs):
            ic = in_channels if i == 0 else out_channels
            bound = 1.0 / np.sqrt(ic * 3)           # PyTorch Conv1d default
            kw, kb = jax.random.split(keys[i])
            self.conv_w.append(jax.random.uniform(
                kw, (out_channels, ic, 3), jnp.float32, -bound, bound))
            self.conv_b.append(jax.random.uniform(
                kb, (out_channels,), jnp.float32, -bound, bound))
        if self.has_out_conv:
            bound = 1.0 / np.sqrt(in_channels)
            kw, kb = jax.random.split(keys[-1])
            self.out_w = jax.random.uniform(
                kw, (out_channels, in_channels), jnp.float32, -bound, bound)
            self.out_b = jax.random.uniform(
                kb, (out_channels,), jnp.float32, -bound, bound)

        # Fused layout: per-layer tap stack (3, oc_p, ic) in bf16.  Layer 0
        # keeps the true in_channels contraction dim (matches unpadded x);
        # later layers use oc_p (their input is the padded y).
        self.w_taps = []
        for i in range(self.n_convs):
            ic = in_channels if i == 0 else out_channels
            ic_p = in_channels if i == 0 else self.c_out_p
            w = jnp.zeros((3, self.c_out_p, ic_p), jnp.float32)
            w = w.at[:, :out_channels, :ic].set(
                jnp.transpose(self.conv_w[i], (2, 0, 1)))
            self.w_taps.append(w.astype(jnp.bfloat16))

        b_all = jnp.zeros((self.n_convs + 1, self.c_out_p, 1), jnp.float32)
        for i in range(self.n_convs):
            b_all = b_all.at[i, :out_channels, 0].set(self.conv_b[i])
        if self.has_out_conv:
            b_all = b_all.at[self.n_convs, :out_channels, 0].set(self.out_b)
            w_out = jnp.zeros((self.c_out_p, in_channels), jnp.float32)
            self.w_out_p = w_out.at[:out_channels, :].set(
                self.out_w).astype(jnp.bfloat16)
        self.b_all = b_all

    def __call__(self, x):
        return tcn_block_forward(x, self)


# ---------------------------------------------------------------------------
# Pure-JAX f32 reference (mirrors the PyTorch TCNBlock forward)
# ---------------------------------------------------------------------------
def reference_forward(blk, x):
    def leaky(v):
        return jnp.where(v >= 0, v, 0.2 * v)

    y = x
    outs = []
    for i in range(blk.n_convs):
        d = 2 ** i
        if i > 0:
            y = leaky(y)
        y = jax.lax.conv_general_dilated(
            y, blk.conv_w[i], window_strides=(1,), padding=[(d, d)],
            rhs_dilation=(d,), dimension_numbers=("NCH", "OIH", "NCH"))
        y = y + blk.conv_b[i][None, :, None]
        outs.append(y)
    if blk.has_out_conv:
        x = jnp.einsum("oi,nit->not", blk.out_w, x) + blk.out_b[None, :, None]
    ret = x
    for o in outs:
        ret = ret + o
    return leaky(ret)


if __name__ == "__main__":
    key = jax.random.PRNGKey(0)
    k_param, k_x = jax.random.split(key)

    N, C_IN, C_OUT, T, RF = 2, 4, 8, 16, 4      # n_convs = log2(4)+1 = 3
    block = TCNBlockPallas(C_IN, C_OUT, RF, k_param)

    x = jax.random.normal(k_x, (N, C_IN, T), dtype=jnp.float32)

    out = jax.block_until_ready(block(x))
    ref = jax.block_until_ready(reference_forward(block, x))

    assert out.shape == (N, C_OUT, T)
    # bf16 MXU operands with f32 accumulation -> loosened tolerance.
    np.testing.assert_allclose(np.asarray(out), np.asarray(ref),
                               rtol=2e-2, atol=2e-2)

    print("KERNEL_OK")
</pallas_src>

<mosaic_0001>
module attributes {stable_mosaic.version = 11 : i64} {
  func.func @_tcn_fused_kernel(%arg0: i32, %arg1: memref<1x4x16xf32, #tpu.memory_space<vmem>>, %arg2: memref<4x8x1xf32, #tpu.memory_space<vmem>>, %arg3: memref<3x8x4xbf16, #tpu.memory_space<vmem>>, %arg4: memref<3x8x8xbf16, #tpu.memory_space<vmem>>, %arg5: memref<3x8x8xbf16, #tpu.memory_space<vmem>>, %arg6: memref<8x4xbf16, #tpu.memory_space<vmem>>, %arg7: memref<1x8x16xf32, #tpu.memory_space<vmem>>, %arg8: memref<8x24xf32, #tpu.memory_space<vmem>>) attributes {dimension_semantics = [#tpu.dimension_semantics<parallel>], iteration_bounds = array<i64: 2>, scalar_prefetch = 0 : i64, scratch_operands = 1 : i64, tpu.core_type = #tpu.core_type<tc>, window_params = [{transform_indices = @transform_0, window_bounds = array<i64: 1, 4, 16>}, {pipeline_mode = #tpu.pipeline_mode<synchronous>, transform_indices = @transform_1, window_bounds = array<i64: 4, 8, 1>}, {pipeline_mode = #tpu.pipeline_mode<synchronous>, transform_indices = @transform_2, window_bounds = array<i64: 3, 8, 4>}, {pipeline_mode = #tpu.pipeline_mode<synchronous>, transform_indices = @transform_3, window_bounds = array<i64: 3, 8, 8>}, {pipeline_mode = #tpu.pipeline_mode<synchronous>, transform_indices = @transform_4, window_bounds = array<i64: 3, 8, 8>}, {pipeline_mode = #tpu.pipeline_mode<synchronous>, transform_indices = @transform_5, window_bounds = array<i64: 8, 4>}, {transform_indices = @transform_6, window_bounds = array<i64: 1, 8, 16>}]} {
    %c0 = arith.constant 0 : index
    %c0_0 = arith.constant 0 : index
    %c0_1 = arith.constant 0 : index
    %0 = vector.load %arg1[%c0, %c0_0, %c0_1] : memref<1x4x16xf32, #tpu.memory_space<vmem>>, vector<1x4x16xf32>
    %1 = vector.shape_cast %0 : vector<1x4x16xf32> to vector<4x16xf32>
    %cst = arith.constant 0.000000e+00 : f32
    %2 = vector.broadcast %cst : f32 to vector<8x4xf32>
    %c0_2 = arith.constant 0 : index
    %c0_3 = arith.constant 0 : index
    %3 = vector.load %arg8[%c0_2, %c0_3] : memref<8x24xf32, #tpu.memory_space<vmem>>, vector<8x4xf32>
    tpu.vector_store %arg8[%c0_2, %c0_3], %2 {strides = array<i32>} : memref<8x24xf32, #tpu.memory_space<vmem>>, vector<8x4xf32>,
    %c0_4 = arith.constant 0 : index
    %c20 = arith.constant 20 : index
    %4 = vector.load %arg8[%c0_4, %c20] : memref<8x24xf32, #tpu.memory_space<vmem>>, vector<8x4xf32>
    tpu.vector_store %arg8[%c0_4, %c20], %2 {strides = array<i32>} : memref<8x24xf32, #tpu.memory_space<vmem>>, vector<8x4xf32>,
    %c0_5 = arith.constant 0 : index
    %c0_6 = arith.constant 0 : index
    %5 = vector.load %arg6[%c0_5, %c0_6] : memref<8x4xbf16, #tpu.memory_space<vmem>>, vector<8x4xbf16>
    %6 = arith.truncf %1 : vector<4x16xf32> to vector<4x16xbf16>
    %cst_7 = arith.constant dense<0.000000e+00> : vector<8x16xf32>
    %7 = tpu.matmul %5, %6, %cst_7 {dimension_numbers = #tpu.dot_dimension_numbers<[1], [0], [0], [1], [0, 0, 1, 1], [], []>} : vector<8x4xbf16>, vector<4x16xbf16>, vector<8x16xf32> -> vector<8x16xf32>
    %c3 = arith.constant 3 : index
    %c0_8 = arith.constant 0 : index
    %c0_9 = arith.constant 0 : index
    %8 = vector.load %arg2[%c3, %c0_8, %c0_9] : memref<4x8x1xf32, #tpu.memory_space<vmem>>, vector<1x8x1xf32>
    %9 = vector.shape_cast %8 : vector<1x8x1xf32> to vector<8x1xf32>
    %10 = vector.broadcast %9 : vector<8x1xf32> to vector<8x16xf32>
    %11 = arith.addf %7, %10 : vector<8x16xf32>
    %c0_10 = arith.constant 0 : index
    %c4 = arith.constant 4 : index
    %12 = vector.load %arg8[%c0_10, %c4] : memref<8x24xf32, #tpu.memory_space<vmem>>, vector<4x16xf32>
    tpu.vector_store %arg8[%c0_10, %c4], %1 {strides = array<i32>} : memref<8x24xf32, #tpu.memory_space<vmem>>, vector<4x16xf32>,
    %13 = arith.truncf %1 : vector<4x16xf32> to vector<4x16xbf16>
    %c1 = arith.constant 1 : index
    %c0_11 = arith.constant 0 : index
    %c0_12 = arith.constant 0 : index
    %14 = vector.load %arg3[%c1, %c0_11, %c0_12] : memref<3x8x4xbf16, #tpu.memory_space<vmem>>, vector<1x8x4xbf16>
    %15 = vector.shape_cast %14 : vector<1x8x4xbf16> to vector<8x4xbf16>
    %cst_13 = arith.constant dense<0.000000e+00> : vector<8x16xf32>
    %16 = tpu.matmul %15, %13, %cst_13 {dimension_numbers = #tpu.dot_dimension_numbers<[1], [0], [0], [1], [0, 0, 1, 1], [], []>} : vector<8x4xbf16>, vector<4x16xbf16>, vector<8x16xf32> -> vector<8x16xf32>
    %c0_14 = arith.constant 0 : index
    %c0_15 = arith.constant 0 : index
    %c0_16 = arith.constant 0 : index
    %17 = vector.load %arg3[%c0_14, %c0_15, %c0_16] : memref<3x8x4xbf16, #tpu.memory_space<vmem>>, vector<1x8x4xbf16>
    %18 = vector.shape_cast %17 : vector<1x8x4xbf16> to vector<8x4xbf16>
    %c0_17 = arith.constant 0 : index
    %c3_18 = arith.constant 3 : index
    %19 = vector.load %arg8[%c0_17, %c3_18] : memref<8x24xf32, #tpu.memory_space<vmem>>, vector<4x16xf32>
    %20 = arith.truncf %19 : vector<4x16xf32> to vector<4x16xbf16>
    %cst_19 = arith.constant dense<0.000000e+00> : vector<8x16xf32>
    %21 = tpu.matmul %18, %20, %cst_19 {dimension_numbers = #tpu.dot_dimension_numbers<[1], [0], [0], [1], [0, 0, 1, 1], [], []>} : vector<8x4xbf16>, vector<4x16xbf16>, vector<8x16xf32> -> vector<8x16xf32>
    %22 = arith.addf %16, %21 : vector<8x16xf32>
    %c2 = arith.constant 2 : index
    %c0_20 = arith.constant 0 : index
    %c0_21 = arith.constant 0 : index
    %23 = vector.load %arg3[%c2, %c0_20, %c0_21] : memref<3x8x4xbf16, #tpu.memory_space<vmem>>, vector<1x8x4xbf16>
    %24 = vector.shape_cast %23 : vector<1x8x4xbf16> to vector<8x4xbf16>
    %c0_22 = arith.constant 0 : index
    %c5 = arith.constant 5 : index
    %25 = vector.load %arg8[%c0_22, %c5] : memref<8x24xf32, #tpu.memory_space<vmem>>, vector<4x16xf32>
    %26 = arith.truncf %25 : vector<4x16xf32> to vector<4x16xbf16>
    %cst_23 = arith.constant dense<0.000000e+00> : vector<8x16xf32>
    %27 = tpu.matmul %24, %26, %cst_23 {dimension_numbers = #tpu.dot_dimension_numbers<[1], [0], [0], [1], [0, 0, 1, 1], [], []>} : vector<8x4xbf16>, vector<4x16xbf16>, vector<8x16xf32> -> vector<8x16xf32>
    %28 = arith.addf %22, %27 : vector<8x16xf32>
    %c0_24 = arith.constant 0 : index
    %c0_25 = arith.constant 0 : index
    %c0_26 = arith.constant 0 : index
    %29 = vector.load %arg2[%c0_24, %c0_25, %c0_26] : memref<4x8x1xf32, #tpu.memory_space<vmem>>, vector<1x8x1xf32>
    %30 = vector.shape_cast %29 : vector<1x8x1xf32> to vector<8x1xf32>
    %31 = vector.broadcast %30 : vector<8x1xf32> to vector<8x16xf32>
    %32 = arith.addf %28, %31 : vector<8x16xf32>
    %33 = arith.addf %11, %32 : vector<8x16xf32>
    %cst_27 = arith.constant 2.000000e-01 : f32
    %34 = vector.broadcast %cst_27 : f32 to vector<8x16xf32>
    %35 = arith.mulf %34, %32 : vector<8x16xf32>
    %36 = arith.maximumf %32, %35 : vector<8x16xf32>
    %c0_28 = arith.constant 0 : index
    %c4_29 = arith.constant 4 : index
    %37 = vector.load %arg8[%c0_28, %c4_29] : memref<8x24xf32, #tpu.memory_space<vmem>>, vector<8x16xf32>
    tpu.vector_store %arg8[%c0_28, %c4_29], %36 {strides = array<i32>} : memref<8x24xf32, #tpu.memory_space<vmem>>, vector<8x16xf32>,
    %38 = arith.truncf %36 : vector<8x16xf32> to vector<8x16xbf16>
    %c1_30 = arith.constant 1 : index
    %c0_31 = arith.constant 0 : index
    %c0_32 = arith.constant 0 : index
    %39 = vector.load %arg4[%c1_30, %c0_31, %c0_32] : memref<3x8x8xbf16, #tpu.memory_space<vmem>>, vector<1x8x8xbf16>
    %40 = vector.shape_cast %39 : vector<1x8x8xbf16> to vector<8x8xbf16>
    %cst_33 = arith.constant dense<0.000000e+00> : vector<8x16xf32>
    %41 = tpu.matmul %40, %38, %cst_33 {dimension_numbers = #tpu.dot_dimension_numbers<[1], [0], [0], [1], [0, 0, 1, 1], [], []>} : vector<8x8xbf16>, vector<8x16xbf16>, vector<8x16xf32> -> vector<8x16xf32>
    %c0_34 = arith.constant 0 : index
    %c0_35 = arith.constant 0 : index
    %c0_36 = arith.constant 0 : index
    %42 = vector.load %arg4[%c0_34, %c0_35, %c0_36] : memref<3x8x8xbf16, #tpu.memory_space<vmem>>, vector<1x8x8xbf16>
    %43 = vector.shape_cast %42 : vector<1x8x8xbf16> to vector<8x8xbf16>
    %c0_37 = arith.constant 0 : index
    %c2_38 = arith.constant 2 : index
    %44 = vector.load %arg8[%c0_37, %c2_38] : memref<8x24xf32, #tpu.memory_space<vmem>>, vector<8x16xf32>
    %45 = arith.truncf %44 : vector<8x16xf32> to vector<8x16xbf16>
    %cst_39 = arith.constant dense<0.000000e+00> : vector<8x16xf32>
    %46 = tpu.matmul %43, %45, %cst_39 {dimension_numbers = #tpu.dot_dimension_numbers<[1], [0], [0], [1], [0, 0, 1, 1], [], []>} : vector<8x8xbf16>, vector<8x16xbf16>, vector<8x16xf32> -> vector<8x16xf32>
    %47 = arith.addf %41, %46 : vector<8x16xf32>
    %c2_40 = arith.constant 2 : index
    %c0_41 = arith.constant 0 : index
    %c0_42 = arith.constant 0 : index
    %48 = vector.load %arg4[%c2_40, %c0_41, %c0_42] : memref<3x8x8xbf16, #tpu.memory_space<vmem>>, vector<1x8x8xbf16>
    %49 = vector.shape_cast %48 : vector<1x8x8xbf16> to vector<8x8xbf16>
    %c0_43 = arith.constant 0 : index
    %c6 = arith.constant 6 : index
    %50 = vector.load %arg8[%c0_43, %c6] : memref<8x24xf32, #tpu.memory_space<vmem>>, vector<8x16xf32>
    %51 = arith.truncf %50 : vector<8x16xf32> to vector<8x16xbf16>
    %cst_44 = arith.constant dense<0.000000e+00> : vector<8x16xf32>
    %52 = tpu.matmul %49, %51, %cst_44 {dimension_numbers = #tpu.dot_dimension_numbers<[1], [0], [0], [1], [0, 0, 1, 1], [], []>} : vector<8x8xbf16>, vector<8x16xbf16>, vector<8x16xf32> -> vector<8x16xf32>
    %53 = arith.addf %47, %52 : vector<8x16xf32>
    %c1_45 = arith.constant 1 : index
    %c0_46 = arith.constant 0 : index
    %c0_47 = arith.constant 0 : index
    %54 = vector.load %arg2[%c1_45, %c0_46, %c0_47] : memref<4x8x1xf32, #tpu.memory_space<vmem>>, vector<1x8x1xf32>
    %55 = vector.shape_cast %54 : vector<1x8x1xf32> to vector<8x1xf32>
    %56 = vector.broadcast %55 : vector<8x1xf32> to vector<8x16xf32>
    %57 = arith.addf %53, %56 : vector<8x16xf32>
    %58 = arith.addf %33, %57 : vector<8x16xf32>
    %cst_48 = arith.constant 2.000000e-01 : f32
    %59 = vector.broadcast %cst_48 : f32 to vector<8x16xf32>
    %60 = arith.mulf %59, %57 : vector<8x16xf32>
    %61 = arith.maximumf %57, %60 : vector<8x16xf32>
    %c0_49 = arith.constant 0 : index
    %c4_50 = arith.constant 4 : index
    %62 = vector.load %arg8[%c0_49, %c4_50] : memref<8x24xf32, #tpu.memory_space<vmem>>, vector<8x16xf32>
    tpu.vector_store %arg8[%c0_49, %c4_50], %61 {strides = array<i32>} : memref<8x24xf32, #tpu.memory_space<vmem>>, vector<8x16xf32>,
    %63 = arith.truncf %61 : vector<8x16xf32> to vector<8x16xbf16>
    %c1_51 = arith.constant 1 : index
    %c0_52 = arith.constant 0 : index
    %c0_53 = arith.constant 0 : index
    %64 = vector.load %arg5[%c1_51, %c0_52, %c0_53] : memref<3x8x8xbf16, #tpu.memory_space<vmem>>, vector<1x8x8xbf16>
    %65 = vector.shape_cast %64 : vector<1x8x8xbf16> to vector<8x8xbf16>
    %cst_54 = arith.constant dense<0.000000e+00> : vector<8x16xf32>
    %66 = tpu.matmul %65, %63, %cst_54 {dimension_numbers = #tpu.dot_dimension_numbers<[1], [0], [0], [1], [0, 0, 1, 1], [], []>} : vector<8x8xbf16>, vector<8x16xbf16>, vector<8x16xf32> -> vector<8x16xf32>
    %c0_55 = arith.constant 0 : index
    %c0_56 = arith.constant 0 : index
    %c0_57 = arith.constant 0 : index
    %67 = vector.load %arg5[%c0_55, %c0_56, %c0_57] : memref<3x8x8xbf16, #tpu.memory_space<vmem>>, vector<1x8x8xbf16>
    %68 = vector.shape_cast %67 : vector<1x8x8xbf16> to vector<8x8xbf16>
    %c0_58 = arith.constant 0 : index
    %c0_59 = arith.constant 0 : index
    %69 = vector.load %arg8[%c0_58, %c0_59] : memref<8x24xf32, #tpu.memory_space<vmem>>, vector<8x16xf32>
    %70 = arith.truncf %69 : vector<8x16xf32> to vector<8x16xbf16>
    %cst_60 = arith.constant dense<0.000000e+00> : vector<8x16xf32>
    %71 = tpu.matmul %68, %70, %cst_60 {dimension_numbers = #tpu.dot_dimension_numbers<[1], [0], [0], [1], [0, 0, 1, 1], [], []>} : vector<8x8xbf16>, vector<8x16xbf16>, vector<8x16xf32> -> vector<8x16xf32>
    %72 = arith.addf %66, %71 : vector<8x16xf32>
    %c2_61 = arith.constant 2 : index
    %c0_62 = arith.constant 0 : index
    %c0_63 = arith.constant 0 : index
    %73 = vector.load %arg5[%c2_61, %c0_62, %c0_63] : memref<3x8x8xbf16, #tpu.memory_space<vmem>>, vector<1x8x8xbf16>
    %74 = vector.shape_cast %73 : vector<1x8x8xbf16> to vector<8x8xbf16>
    %c0_64 = arith.constant 0 : index
    %c8 = arith.constant 8 : index
    %75 = vector.load %arg8[%c0_64, %c8] : memref<8x24xf32, #tpu.memory_space<vmem>>, vector<8x16xf32>
    %76 = arith.truncf %75 : vector<8x16xf32> to vector<8x16xbf16>
    %cst_65 = arith.constant dense<0.000000e+00> : vector<8x16xf32>
    %77 = tpu.matmul %74, %76, %cst_65 {dimension_numbers = #tpu.dot_dimension_numbers<[1], [0], [0], [1], [0, 0, 1, 1], [], []>} : vector<8x8xbf16>, vector<8x16xbf16>, vector<8x16xf32> -> vector<8x16xf32>
    %78 = arith.addf %72, %77 : vector<8x16xf32>
    %c2_66 = arith.constant 2 : index
    %c0_67 = arith.constant 0 : index
    %c0_68 = arith.constant 0 : index
    %79 = vector.load %arg2[%c2_66, %c0_67, %c0_68] : memref<4x8x1xf32, #tpu.memory_space<vmem>>, vector<1x8x1xf32>
    %80 = vector.shape_cast %79 : vector<1x8x1xf32> to vector<8x1xf32>
    %81 = vector.broadcast %80 : vector<8x1xf32> to vector<8x16xf32>
    %82 = arith.addf %78, %81 : vector<8x16xf32>
    %83 = arith.addf %58, %82 : vector<8x16xf32>
    %cst_69 = arith.constant 2.000000e-01 : f32
    %84 = vector.broadcast %cst_69 : f32 to vector<8x16xf32>
    %85 = arith.mulf %84, %83 : vector<8x16xf32>
    %86 = arith.maximumf %83, %85 : vector<8x16xf32>
    %c0_70 = arith.constant 0 : index
    %c0_71 = arith.constant 0 : index
    %c0_72 = arith.constant 0 : index
    %87 = vector.load %arg7[%c0_70, %c0_71, %c0_72] : memref<1x8x16xf32, #tpu.memory_space<vmem>>, vector<1x8x16xf32>
    %88 = vector.shape_cast %87 : vector<1x8x16xf32> to vector<8x16xf32>
    %89 = vector.shape_cast %86 : vector<8x16xf32> to vector<1x8x16xf32>
    tpu.vector_store %arg7[%c0_70, %c0_71, %c0_72], %89 {strides = array<i32>} : memref<1x8x16xf32, #tpu.memory_space<vmem>>, vector<1x8x16xf32>,
    return
  }
  func.func @transform_0(%arg0: i32) -> (i32, i32, i32) {
    %c0_i32 = arith.constant 0 : i32
    %c0_i32_0 = arith.constant 0 : i32
    %c0_i32_1 = arith.constant 0 : i32
    return %arg0, %c0_i32, %c0_i32_0 : i32, i32, i32
  }
  func.func @transform_1(%arg0: i32) -> (i32, i32, i32) {
    %c0_i32 = arith.constant 0 : i32
    %c0_i32_0 = arith.constant 0 : i32
    %c0_i32_1 = arith.constant 0 : i32
    %c0_i32_2 = arith.constant 0 : i32
    return %c0_i32, %c0_i32_0, %c0_i32_1 : i32, i32, i32
  }
  func.func @transform_2(%arg0: i32) -> (i32, i32, i32) {
    %c0_i32 = arith.constant 0 : i32
    %c0_i32_0 = arith.constant 0 : i32
    %c0_i32_1 = arith.constant 0 : i32
    %c0_i32_2 = arith.constant 0 : i32
    return %c0_i32, %c0_i32_0, %c0_i32_1 : i32, i32, i32
  }
  func.func @transform_3(%arg0: i32) -> (i32, i32, i32) {
    %c0_i32 = arith.constant 0 : i32
    %c0_i32_0 = arith.constant 0 : i32
    %c0_i32_1 = arith.constant 0 : i32
    %c0_i32_2 = arith.constant 0 : i32
    return %c0_i32, %c0_i32_0, %c0_i32_1 : i32, i32, i32
  }
  func.func @transform_4(%arg0: i32) -> (i32, i32, i32) {
    %c0_i32 = arith.constant 0 : i32
    %c0_i32_0 = arith.constant 0 : i32
    %c0_i32_1 = arith.constant 0 : i32
    %c0_i32_2 = arith.constant 0 : i32
    return %c0_i32, %c0_i32_0, %c0_i32_1 : i32, i32, i32
  }
  func.func @transform_5(%arg0: i32) -> (i32, i32) {
    %c0_i32 = arith.constant 0 : i32
    %c0_i32_0 = arith.constant 0 : i32
    %c0_i32_1 = arith.constant 0 : i32
    return %c0_i32, %c0_i32_0 : i32, i32
  }
  func.func @transform_6(%arg0: i32) -> (i32, i32, i32) {
    %c0_i32 = arith.constant 0 : i32
    %c0_i32_0 = arith.constant 0 : i32
    %c0_i32_1 = arith.constant 0 : i32
    return %arg0, %c0_i32, %c0_i32_0 : i32, i32, i32
  }
}

</mosaic_0001>

<llo_original>
// kernel: tpu_custom_call.1
$region0: #{tpu_custom_call.1}
  #allocation0 [shape = 'u32[]', space=smem, size = 0x4, offset = 0x4, fixed_abs, tag = 'smem constant byte address 0x4 - core index']
  #allocation1 [shape = 'u32[144,128]{1,0:T(1,128)}', space=vmem, size = 0x12000, scoped, tag = 'internal scratch']
  #allocation2 [shape = 'f32[8,24]{1,0:T(8,128)}', space=vmem, size = 0x1000, scoped, tag = 'scratch operand']
  %s0 = inlined_call_operand.vmem [shape: f32[2,4,16], index: 0, kind: input, shape index: {}]
  %s1 = inlined_call_operand.vmem [shape: f32[4,8,1], index: 1, kind: input, shape index: {}]
  %s2 = inlined_call_operand.vmem [shape: bf16[3,8,4], index: 2, kind: input, shape index: {}]
  %s3 = inlined_call_operand.vmem [shape: bf16[3,8,8], index: 3, kind: input, shape index: {}]
  %s4 = inlined_call_operand.vmem [shape: bf16[3,8,8], index: 4, kind: input, shape index: {}]
  %s5 = inlined_call_operand.vmem [shape: bf16[8,4], index: 5, kind: input, shape index: {}]
  %s6 = inlined_call_operand.hbm [shape: f32[2,8,16], index: 6, kind: output, shape index: {}]
  %s7 = sld [smem:[#allocation0]]
  $region57: #{tpu_custom_call.1} parent=0
    _
  %s9 = ssub.s32 1, %s7
  %s10 = scalar_select 0, %s9, %s7
  $region1: #{tpu_custom_call.1} parent=0
    #allocation3 [shape = 'u8[8192]{0}', space=vmem, size = 0x2000, scoped, tag = 'output window, operand 0']
    #allocation4 [shape = 's32[2]{0}', space=sflag, size = 0x8, scoped, tag = 'scoped memory for tpu_custom_call.1']
    %11 = vsyncpa [#allocation4], 0
    %s12 = scalar_lea.sflag [#allocation4], 1
    %13 = vsyncpa %s12, 0
    loop: start=0, step=1, limit=4
    $region2: #{tpu_custom_call.1} parent=1 // loop_pre_header
      _
    $region3: #{tpu_custom_call.1} parent=1 // loop_header
      %s15 = sphi 0, %s19
      %p16 = scmp.ge.s32.totalorder %s15, 4
      %s25 = sphi 0, %s27
      %s28 = sphi 0, %s25
      %s29 = sphi 0, %s28
      %s45 = sphi 0, %s29
      %s49 = sphi 0, %s49
      %s51 = sphi 0, %s49
      %s52 = sphi 0, %s51
      %s66 = sphi 0, %s52
      %s70 = sphi 0, %s70
      %s72 = sphi 0, %s70
      %s73 = sphi 0, %s72
      %s87 = sphi 0, %s73
      %s91 = sphi 0, %s91
      %s93 = sphi 0, %s91
      %s94 = sphi 0, %s93
      %s108 = sphi 0, %s94
      %s112 = sphi 0, %s112
      %s114 = sphi 0, %s112
      %s115 = sphi 0, %s114
      %s129 = sphi 0, %s115
      %s133 = sphi 0, %s133
      %s135 = sphi 0, %s133
      %s136 = sphi 0, %s135
      %s150 = sphi 0, %s136
      %s156 = sphi 0, %s158
      %s159 = sphi 0, %s156
      %s160 = sphi 0, %s159
      %s176 = sphi 0, %s160
    $region4: #{tpu_custom_call.1} parent=1 // loop_header_branch
      %18 = sbr.rel (%p16) target = $region8
    $region5: #{tpu_custom_call.1} parent=1 // loop_body
      %s20 = ssub.s32 %s15, 1
      %s21 = ssub.s32 %s15, 2
      %s22 = sadd.s32 %s15, 1
      %s23 = ssub.s32 %s15, %s22
      %p24 = scmp.eq.s32.totalorder %s23, 0
      %s26 = sadd.s32 %s25, 1
      %s27 = scalar_select %p24, %s25, %s26
      %p30 = pneg %p24
      %p31 = scmp.eq.s32.totalorder %s15, 1
      %p32 = por %p30, %p31
      %p33 = scmp.ne.s32.totalorder %s25, %s28
      %p34 = scmp.eq.s32.totalorder %s15, 0
      %p35 = por %p33, %p34
      %p36 = scmp.ne.s32.totalorder %s25, %s28
      %p37 = scmp.eq.s32.totalorder %s20, 1
      %p38 = por %p36, %p37
      %p39 = scmp.ne.s32.totalorder %s28, %s29
      %p40 = scmp.eq.s32.totalorder %s20, 0
      %p41 = por %p39, %p40
      %p42 = scmp.ne.s32.totalorder %s28, %s29
      %p43 = scmp.eq.s32.totalorder %s21, 1
      %p44 = por %p42, %p43
      %p46 = scmp.ne.s32.totalorder %s29, %s45
      %p47 = scmp.eq.s32.totalorder %s21, 0
      %p48 = por %p46, %p47
      %s50 = sadd.s32 %s49, 1
      %p53 = scmp.eq.s32.totalorder %s15, 1
      %p54 = scmp.ne.s32.totalorder %s49, %s51
      %p55 = scmp.eq.s32.totalorder %s15, 0
      %p56 = por %p54, %p55
      %p57 = scmp.ne.s32.totalorder %s49, %s51
      %p58 = scmp.eq.s32.totalorder %s20, 1
      %p59 = por %p57, %p58
      %p60 = scmp.ne.s32.totalorder %s51, %s52
      %p61 = scmp.eq.s32.totalorder %s20, 0
      %p62 = por %p60, %p61
      %p63 = scmp.ne.s32.totalorder %s51, %s52
      %p64 = scmp.eq.s32.totalorder %s21, 1
      %p65 = por %p63, %p64
      %p67 = scmp.ne.s32.totalorder %s52, %s66
      %p68 = scmp.eq.s32.totalorder %s21, 0
      %p69 = por %p67, %p68
      %s71 = sadd.s32 %s70, 1
      %p74 = scmp.eq.s32.totalorder %s15, 1
      %p75 = scmp.ne.s32.totalorder %s70, %s72
      %p76 = scmp.eq.s32.totalorder %s15, 0
      %p77 = por %p75, %p76
      %p78 = scmp.ne.s32.totalorder %s70, %s72
      %p79 = scmp.eq.s32.totalorder %s20, 1
      %p80 = por %p78, %p79
      %p81 = scmp.ne.s32.totalorder %s72, %s73
      %p82 = scmp.eq.s32.totalorder %s20, 0
      %p83 = por %p81, %p82
      %p84 = scmp.ne.s32.totalorder %s72, %s73
      %p85 = scmp.eq.s32.totalorder %s21, 1
      %p86 = por %p84, %p85
      %p88 = scmp.ne.s32.totalorder %s73, %s87
      %p89 = scmp.eq.s32.totalorder %s21, 0
      %p90 = por %p88, %p89
      %s92 = sadd.s32 %s91, 1
      %p95 = scmp.eq.s32.totalorder %s15, 1
      %p96 = scmp.ne.s32.totalorder %s91, %s93
      %p97 = scmp.eq.s32.totalorder %s15, 0
      %p98 = por %p96, %p97
      %p99 = scmp.ne.s32.totalorder %s91, %s93
      %p100 = scmp.eq.s32.totalorder %s20, 1
      %p101 = por %p99, %p100
      %p102 = scmp.ne.s32.totalorder %s93, %s94
      %p103 = scmp.eq.s32.totalorder %s20, 0
      %p104 = por %p102, %p103
      %p105 = scmp.ne.s32.totalorder %s93, %s94
      %p106 = scmp.eq.s32.totalorder %s21, 1
      %p107 = por %p105, %p106
      %p109 = scmp.ne.s32.totalorder %s94, %s108
      %p110 = scmp.eq.s32.totalorder %s21, 0
      %p111 = por %p109, %p110
      %s113 = sadd.s32 %s112, 1
      %p116 = scmp.eq.s32.totalorder %s15, 1
      %p117 = scmp.ne.s32.totalorder %s112, %s114
      %p118 = scmp.eq.s32.totalorder %s15, 0
      %p119 = por %p117, %p118
      %p120 = scmp.ne.s32.totalorder %s112, %s114
      %p121 = scmp.eq.s32.totalorder %s20, 1
      %p122 = por %p120, %p121
      %p123 = scmp.ne.s32.totalorder %s114, %s115
      %p124 = scmp.eq.s32.totalorder %s20, 0
      %p125 = por %p123, %p124
      %p126 = scmp.ne.s32.totalorder %s114, %s115
      %p127 = scmp.eq.s32.totalorder %s21, 1
      %p128 = por %p126, %p127
      %p130 = scmp.ne.s32.totalorder %s115, %s129
      %p131 = scmp.eq.s32.totalorder %s21, 0
      %p132 = por %p130, %p131
      %s134 = sadd.s32 %s133, 1
      %p137 = scmp.eq.s32.totalorder %s15, 1
      %p138 = scmp.ne.s32.totalorder %s133, %s135
      %p139 = scmp.eq.s32.totalorder %s15, 0
      %p140 = por %p138, %p139
      %p141 = scmp.ne.s32.totalorder %s133, %s135
      %p142 = scmp.eq.s32.totalorder %s20, 1
      %p143 = por %p141, %p142
      %p144 = scmp.ne.s32.totalorder %s135, %s136
      %p145 = scmp.eq.s32.totalorder %s20, 0
      %p146 = por %p144, %p145
      %p147 = scmp.ne.s32.totalorder %s135, %s136
      %p148 = scmp.eq.s32.totalorder %s21, 1
      %p149 = por %p147, %p148
      %p151 = scmp.ne.s32.totalorder %s136, %s150
      %p152 = scmp.eq.s32.totalorder %s21, 0
      %p153 = por %p151, %p152
      %s154 = ssub.s32 %s15, %s22
      %p155 = scmp.eq.s32.totalorder %s154, 0
      %s157 = sadd.s32 %s156, 1
      %s158 = scalar_select %p155, %s156, %s157
      %p161 = pneg %p155
      %p162 = scmp.eq.s32.totalorder %s15, 1
      %p163 = por %p161, %p162
      %p164 = scmp.ne.s32.totalorder %s156, %s159
      %p165 = scmp.eq.s32.totalorder %s15, 0
      %p166 = por %p164, %p165
      %p167 = scmp.ne.s32.totalorder %s156, %s159
      %p168 = scmp.eq.s32.totalorder %s20, 1
      %p169 = por %p167, %p168
      %p170 = scmp.ne.s32.totalorder %s159, %s160
      %p171 = scmp.eq.s32.totalorder %s20, 0
      %p172 = por %p170, %p171
      %p173 = scmp.ne.s32.totalorder %s159, %s160
      %p174 = scmp.eq.s32.totalorder %s21, 1
      %p175 = por %p173, %p174
      %p177 = scmp.ne.s32.totalorder %s160, %s176
      %p178 = scmp.eq.s32.totalorder %s21, 0
      %p179 = por %p177, %p178
      %p180 = scmp.le.s32.totalorder 1, %s15
      %p181 = scmp.lt.s32.totalorder %s15, 3
      %p182 = pnand %p180, %p181
      %p183 = pneg %p182
      // Predicated region
      $region9: #{tpu_custom_call.1} parent=5 // pred_check
        _
      $region10: #{tpu_custom_call.1} parent=5 // pred_check_branch
        %185 = sbr.rel (%p182) target = $region12
      $region11: #{tpu_custom_call.1} parent=5 // pred_region
        %s186 = ssub.s32 %s15, 1
        // Predicated region
        $region13: #{tpu_custom_call.1} parent=11 // pred_check
          %p187 = pneg %p62
        $region14: #{tpu_custom_call.1} parent=11 // pred_check_branch
          %189 = sbr.rel (%p187) target = $region16
        $region15: #{tpu_custom_call.1} parent=11 // pred_region
          _
        $region16: #{tpu_custom_call.1} parent=11 // pred_fallthru
          _
        // Predicated region
        $region17: #{tpu_custom_call.1} parent=11 // pred_check
          %p190 = pneg %p83
        $region18: #{tpu_custom_call.1} parent=11 // pred_check_branch
          %192 = sbr.rel (%p190) target = $region20
        $region19: #{tpu_custom_call.1} parent=11 // pred_region
          _
        $region20: #{tpu_custom_call.1} parent=11 // pred_fallthru
          _
        // Predicated region
        $region21: #{tpu_custom_call.1} parent=11 // pred_check
          %p193 = pneg %p104
        $region22: #{tpu_custom_call.1} parent=11 // pred_check_branch
          %195 = sbr.rel (%p193) target = $region24
        $region23: #{tpu_custom_call.1} parent=11 // pred_region
          _
        $region24: #{tpu_custom_call.1} parent=11 // pred_fallthru
          _
        // Predicated region
        $region25: #{tpu_custom_call.1} parent=11 // pred_check
          %p196 = pneg %p125
        $region26: #{tpu_custom_call.1} parent=11 // pred_check_branch
          %198 = sbr.rel (%p196) target = $region28
        $region27: #{tpu_custom_call.1} parent=11 // pred_region
          _
        $region28: #{tpu_custom_call.1} parent=11 // pred_fallthru
          _
        // Predicated region
        $region29: #{tpu_custom_call.1} parent=11 // pred_check
          %p199 = pneg %p146
        $region30: #{tpu_custom_call.1} parent=11 // pred_check_branch
          %201 = sbr.rel (%p199) target = $region32
        $region31: #{tpu_custom_call.1} parent=11 // pred_region
          _
        $region32: #{tpu_custom_call.1} parent=11 // pred_fallthru
          _
      $region12: #{tpu_custom_call.1} parent=5 // pred_fallthru
        _
      %p202 = scmp.lt.s32.totalorder %s15, 2
      // Predicated region
      $region33: #{tpu_custom_call.1} parent=5 // pred_check
        %p203 = pneg %p202
      $region34: #{tpu_custom_call.1} parent=5 // pred_check_branch
        %205 = sbr.rel (%p203) target = $region36
      $region35: #{tpu_custom_call.1} parent=5 // pred_region
        // Predicated region
        $region37: #{tpu_custom_call.1} parent=35 // pred_check
          %p206 = pneg %p35
        $region38: #{tpu_custom_call.1} parent=35 // pred_check_branch
          %208 = sbr.rel (%p206) target = $region40
        $region39: #{tpu_custom_call.1} parent=35 // pred_region
          %p209 = scmp.lt.s32.totalorder %s15, 1
          %s210 = scalar_select %p209, %s15, 1
          %s211 = smul.addr %s210, 4
          %s212 = scalar_lea.vmem %s0, %s211
        $region40: #{tpu_custom_call.1} parent=35 // pred_fallthru
          _
      $region36: #{tpu_custom_call.1} parent=5 // pred_fallthru
        _
      %p213 = scmp.le.s32.totalorder 1, %s15
      %p214 = scmp.lt.s32.totalorder %s15, 3
      %p215 = pnand %p213, %p214
      %p216 = pneg %p215
      // Predicated region
      $region41: #{tpu_custom_call.1} parent=5 // pred_check
        _
      $region42: #{tpu_custom_call.1} parent=5 // pred_check_branch
        %218 = sbr.rel (%p215) target = $region44
      $region43: #{tpu_custom_call.1} parent=5 // pred_region
        %s219 = ssub.s32 %s15, 1
        %p220 = scmp.lt.s32.totalorder %s20, 1
        %s221 = scalar_select %p220, %s20, 1
        %s222 = smul.addr %s221, 4
        %s223 = scalar_lea.vmem %s0, %s222
        %p224 = pneg %p41
        %p225 = pneg %p38
        %p226 = pneg %p62
        %p227 = pneg %p59
        %p228 = pneg %p83
        %p229 = pneg %p80
        %p230 = pneg %p104
        %p231 = pneg %p101
        %p232 = pneg %p125
        %p233 = pneg %p122
        %p234 = pneg %p146
        %p235 = pneg %p143
        %p236 = pneg %p172
        %p237 = pneg %p169
        %s238 = sand.u32 %s159, 1
        %s239 = scalar_lea.sflag [#allocation4], %s238
        %s240 = sand.u32 %s159, 1
        %s241 = smul.addr %s240, 8
        %s242 = scalar_lea.vmem [#allocation3], %s241
        %p243 = scmp.lt.s32.totalorder %s20, 1
        %s244 = scalar_select %p243, %s20, 1
        %s245 = smul.addr %s244, 4
        %s246 = scalar_lea.vmem %s0, %s245
        %v248 = vld [vmem:[%s246] sm:$0xf]
        %vm249 = vcmask 31744
        %250 = vst.msk [vmem:[#allocation2] sm:$0xff] %vm249, 0.0
        %vm251 = vcmask 195744
        %252 = vst.msk [vmem:[#allocation2] sm:$0xff] %vm251, 0.0
        %v253 = vld [vmem:[%s5] sm:$0xf]
        %v254 = vpack.c.bf16 %v248, %v248
        %s255 = scalar_lea.vmem %s1, 24
        %v256 = vld [vmem:[%s255] sm:$0xff]
        %258 = vset.pattern.permute.xlu0 0
        %259 = vperm.xlu0 %258, %v256
        %v260 = vpop.permute.xlu0 %259
        %v263 = vsel %vm249, %v253, 0
        %vm265 = vcmask 1041408
        %v267 = vsel %vm265, %v254, 0
        %269 = vmatprep.subr.bf16.mxu0 0
        %270 = vmatpush1.bf16.msra.mxu0 0
        %271 = vmatprep.subr.bf16.mxu0 0
        %272 = vmatpush1.bf16.msra.mxu0 0
        %273 = vmatprep.subr.bf16.mxu0 0
        %274 = vmatpush1.bf16.msra.mxu0 0
        %275 = vmatprep.subr.bf16.mxu0 0
        %276 = vmatpush1.bf16.msra.mxu0 0
        %277 = vmatprep.subr.bf16.mxu0 0
        %278 = vmatpush1.bf16.msra.mxu0 0
        %279 = vmatprep.subr.bf16.mxu0 0
        %280 = vmatpush1.bf16.msra.mxu0 0
        %281 = vmatprep.subr.bf16.mxu0 0
        %282 = vmatpush1.bf16.msra.mxu0 0
        %283 = vmatprep.subr.bf16.mxu0 0
        %284 = vmatpush1.bf16.msra.mxu0 %v267
        %285 = vmatprep.subr.bf16.mxu0 0
        %286 = vmatpush2.bf16.msra.mxu0 0
        %287 = vmatprep.subr.bf16.mxu0 0
        %288 = vmatpush2.bf16.msra.mxu0 0
        %289 = vmatprep.subr.bf16.mxu0 0
        %290 = vmatpush2.bf16.msra.mxu0 0
        %291 = vmatprep.subr.bf16.mxu0 0
        %292 = vmatpush2.bf16.msra.mxu0 0
        %293 = vmatprep.subr.bf16.mxu0 0
        %294 = vmatpush2.bf16.msra.mxu0 0
        %295 = vmatprep.subr.bf16.mxu0 0
        %296 = vmatpush2.bf16.msra.mxu0 0
        %297 = vmatprep.subr.bf16.mxu0 0
        %298 = vmatpush2.bf16.msra.mxu0 0
        %299 = vmatprep.subr.bf16.mxu0 0
        %300 = vmatpush2.bf16.msra.mxu0 0
        %301 = vmatprep.mubr.bf16.mxu0 0
        %302 = vmatmul.mubr.bf16.gmra.mxu0 %v263
        %v303 = vpop.f32.mrf.mxu0
        %v304 = vadd.f32 %v260, %v303
        %v305 = vpop.f32.mrf.mxu0
        %v306 = vpop.f32.mrf.mxu0
        %v307 = vpop.f32.mrf.mxu0
        %308 = vdwg.mxu0
        %310 = vrot.lane.b32.xlu0 %v248, 4
        %v311 = vpop.permute.xlu0 %310
        %vm313 = vcmask 158752
        %314 = vst.msk [vmem:[#allocation2] sm:$0xf] %vm313, %v311
        %s315 = scalar_lea.vmem %s2, 4
        %v316 = vld [vmem:[%s315] sm:$0xf]
        %v317 = vld [vmem:[%s2] sm:$0xf]
        %v318 = vld [vmem:[#allocation2] sm:$0xf]
        %v319 = vpack.c.bf16 %v318, %v318
        %321 = vrot.lane.b32.xlu0 %v319, 125
        %v322 = vpop.permute.xlu0 %321
        %v324 = vsel %vm249, %v317, 0
        %v327 = vsel %vm265, %v322, 0
        %329 = vmatprep.subr.bf16.mxu0 0
        %330 = vmatpush1.bf16.msra.mxu0 0
        %331 = vmatprep.subr.bf16.mxu0 0
        %332 = vmatpush1.bf16.msra.mxu0 0
        %333 = vmatprep.subr.bf16.mxu0 0
        %334 = vmatpush1.bf16.msra.mxu0 0
        %335 = vmatprep.subr.bf16.mxu0 0
        %336 = vmatpush1.bf16.msra.mxu0 0
        %337 = vmatprep.subr.bf16.mxu0 0
        %338 = vmatpush1.bf16.msra.mxu0 0
        %339 = vmatprep.subr.bf16.mxu0 0
        %340 = vmatpush1.bf16.msra.mxu0 0
        %341 = vmatprep.subr.bf16.mxu0 0
        %342 = vmatpush1.bf16.msra.mxu0 0
        %343 = vmatprep.subr.bf16.mxu0 0
        %344 = vmatpush1.bf16.msra.mxu0 %v327
        %345 = vmatprep.subr.bf16.mxu0 0
        %346 = vmatpush2.bf16.msra.mxu0 0
        %347 = vmatprep.subr.bf16.mxu0 0
        %348 = vmatpush2.bf16.msra.mxu0 0
        %349 = vmatprep.subr.bf16.mxu0 0
        %350 = vmatpush2.bf16.msra.mxu0 0
        %351 = vmatprep.subr.bf16.mxu0 0
        %352 = vmatpush2.bf16.msra.mxu0 0
        %353 = vmatprep.subr.bf16.mxu0 0
        %354 = vmatpush2.bf16.msra.mxu0 0
        %355 = vmatprep.subr.bf16.mxu0 0
        %356 = vmatpush2.bf16.msra.mxu0 0
        %357 = vmatprep.subr.bf16.mxu0 0
        %358 = vmatpush2.bf16.msra.mxu0 0
        %359 = vmatprep.subr.bf16.mxu0 0
        %360 = vmatpush2.bf16.msra.mxu0 0
        %361 = vmatprep.mubr.bf16.mxu0 0
        %362 = vmatmul.mubr.bf16.gmra.mxu0 %v324
        %v363 = vpop.f32.mrf.mxu0
        %v364 = vadd.f32 0.0, %v363
        %v365 = vpop.f32.mrf.mxu0
        %v366 = vpop.f32.mrf.mxu0
        %v367 = vpop.f32.mrf.mxu0
        %368 = vdwg.mxu0
        %v370 = vsel %vm249, %v316, 0
        %372 = vmatprep.subr.bf16.mxu0 0
        %373 = vmatpush1.bf16.msra.mxu0 0
        %374 = vmatprep.subr.bf16.mxu0 0
        %375 = vmatpush1.bf16.msra.mxu0 0
        %376 = vmatprep.subr.bf16.mxu0 0
        %377 = vmatpush1.bf16.msra.mxu0 0
        %378 = vmatprep.subr.bf16.mxu0 0
        %379 = vmatpush1.bf16.msra.mxu0 0
        %380 = vmatprep.subr.bf16.mxu0 0
        %381 = vmatpush1.bf16.msra.mxu0 0
        %382 = vmatprep.subr.bf16.mxu0 0
        %383 = vmatpush1.bf16.msra.mxu0 0
        %384 = vmatprep.subr.bf16.mxu0 0
        %385 = vmatpush1.bf16.msra.mxu0 0
        %386 = vmatprep.subr.bf16.mxu0 0
        %387 = vmatpush1.bf16.msra.mxu0 %v267
        %388 = vmatprep.subr.bf16.mxu0 0
        %389 = vmatpush2.bf16.msra.mxu0 0
        %390 = vmatprep.subr.bf16.mxu0 0
        %391 = vmatpush2.bf16.msra.mxu0 0
        %392 = vmatprep.subr.bf16.mxu0 0
        %393 = vmatpush2.bf16.msra.mxu0 0
        %394 = vmatprep.subr.bf16.mxu0 0
        %395 = vmatpush2.bf16.msra.mxu0 0
        %396 = vmatprep.subr.bf16.mxu0 0
        %397 = vmatpush2.bf16.msra.mxu0 0
        %398 = vmatprep.subr.bf16.mxu0 0
        %399 = vmatpush2.bf16.msra.mxu0 0
        %400 = vmatprep.subr.bf16.mxu0 0
        %401 = vmatpush2.bf16.msra.mxu0 0
        %402 = vmatprep.subr.bf16.mxu0 0
        %403 = vmatpush2.bf16.msra.mxu0 0
        %404 = vmatprep.mubr.bf16.mxu0 0
        %405 = vmatmul.mubr.bf16.gmra.mxu0 %v370
        %v406 = vpop.f32.mrf.mxu0
        %v407 = vadd.f32 %v364, %v406
        %v408 = vpop.f32.mrf.mxu0
        %v409 = vpop.f32.mrf.mxu0
        %v410 = vpop.f32.mrf.mxu0
        %411 = vdwg.mxu0
        %s412 = scalar_lea.vmem %s2, 8
        %v413 = vld [vmem:[%s412] sm:$0xf]
        %414 = vrot.lane.b32.xlu0 %v319, 123
        %v415 = vpop.permute.xlu0 %414
        %v417 = vsel %vm249, %v413, 0
        %v420 = vsel %vm265, %v415, 0
        %422 = vmatprep.subr.bf16.mxu0 0
        %423 = vmatpush1.bf16.msra.mxu0 0
        %424 = vmatprep.subr.bf16.mxu0 0
        %425 = vmatpush1.bf16.msra.mxu0 0
        %426 = vmatprep.subr.bf16.mxu0 0
        %427 = vmatpush1.bf16.msra.mxu0 0
        %428 = vmatprep.subr.bf16.mxu0 0
        %429 = vmatpush1.bf16.msra.mxu0 0
        %430 = vmatprep.subr.bf16.mxu0 0
        %431 = vmatpush1.bf16.msra.mxu0 0
        %432 = vmatprep.subr.bf16.mxu0 0
        %433 = vmatpush1.bf16.msra.mxu0 0
        %434 = vmatprep.subr.bf16.mxu0 0
        %435 = vmatpush1.bf16.msra.mxu0 0
        %436 = vmatprep.subr.bf16.mxu0 0
        %437 = vmatpush1.bf16.msra.mxu0 %v420
        %438 = vmatprep.subr.bf16.mxu0 0
        %439 = vmatpush2.bf16.msra.mxu0 0
        %440 = vmatprep.subr.bf16.mxu0 0
        %441 = vmatpush2.bf16.msra.mxu0 0
        %442 = vmatprep.subr.bf16.mxu0 0
        %443 = vmatpush2.bf16.msra.mxu0 0
        %444 = vmatprep.subr.bf16.mxu0 0
        %445 = vmatpush2.bf16.msra.mxu0 0
        %446 = vmatprep.subr.bf16.mxu0 0
        %447 = vmatpush2.bf16.msra.mxu0 0
        %448 = vmatprep.subr.bf16.mxu0 0
        %449 = vmatpush2.bf16.msra.mxu0 0
        %450 = vmatprep.subr.bf16.mxu0 0
        %451 = vmatpush2.bf16.msra.mxu0 0
        %452 = vmatprep.subr.bf16.mxu0 0
        %453 = vmatpush2.bf16.msra.mxu0 0
        %454 = vmatprep.mubr.bf16.mxu0 0
        %455 = vmatmul.mubr.bf16.gmra.mxu0 %v417
        %v456 = vpop.f32.mrf.mxu0
        %v457 = vadd.f32 0.0, %v456
        %v458 = vpop.f32.mrf.mxu0
        %v459 = vpop.f32.mrf.mxu0
        %v460 = vpop.f32.mrf.mxu0
        %461 = vdwg.mxu0
        %v462 = vadd.f32 %v407, %v457
        %v463 = vld [vmem:[%s1] sm:$0xff]
        %465 = vset.pattern.permute.xlu0 0
        %466 = vperm.xlu0 %465, %v463
        %v467 = vpop.permute.xlu0 %466
        %v469 = vadd.f32 %v462, %v467
        %v470 = vadd.f32 %v304, %v469
        %v471 = vmul.f32 %v469, 0.2
        %v472 = vmax.f32 %v469, %v471
        %474 = vrot.lane.b32.xlu0 %v472, 4
        %v475 = vpop.permute.xlu0 %474
        %vm477 = vcmask 162848
        %478 = vst.msk [vmem:[#allocation2] sm:$0xff] %vm477, %v475
        %v479 = vpack.c.bf16 %v472, %v472
        %s480 = scalar_lea.vmem %s3, 4
        %v481 = vld [vmem:[%s480] sm:$0xf]
        %v482 = vld [vmem:[%s3] sm:$0xf]
        %v483 = vld [vmem:[#allocation2] sm:$0xff]
        %v484 = vpack.c.bf16 %v483, %v483
        %486 = vrot.lane.b32.xlu0 %v484, 126
        %v487 = vpop.permute.xlu0 %486
        %vm488 = vcmask 64512
        %v490 = vsel %vm488, %v482, 0
        %vm492 = vcmask 1043456
        %v494 = vsel %vm492, %v487, 0
        %496 = vmatprep.subr.bf16.mxu0 0
        %497 = vmatpush1.bf16.msra.mxu0 0
        %498 = vmatprep.subr.bf16.mxu0 0
        %499 = vmatpush1.bf16.msra.mxu0 0
        %500 = vmatprep.subr.bf16.mxu0 0
        %501 = vmatpush1.bf16.msra.mxu0 0
        %502 = vmatprep.subr.bf16.mxu0 0
        %503 = vmatpush1.bf16.msra.mxu0 0
        %504 = vmatprep.subr.bf16.mxu0 0
        %505 = vmatpush1.bf16.msra.mxu0 0
        %506 = vmatprep.subr.bf16.mxu0 0
        %507 = vmatpush1.bf16.msra.mxu0 0
        %508 = vmatprep.subr.bf16.mxu0 0
        %509 = vmatpush1.bf16.msra.mxu0 0
        %510 = vmatprep.subr.bf16.mxu0 0
        %511 = vmatpush1.bf16.msra.mxu0 %v494
        %512 = vmatprep.subr.bf16.mxu0 0
        %513 = vmatpush2.bf16.msra.mxu0 0
        %514 = vmatprep.subr.bf16.mxu0 0
        %515 = vmatpush2.bf16.msra.mxu0 0
        %516 = vmatprep.subr.bf16.mxu0 0
        %517 = vmatpush2.bf16.msra.mxu0 0
        %518 = vmatprep.subr.bf16.mxu0 0
        %519 = vmatpush2.bf16.msra.mxu0 0
        %520 = vmatprep.subr.bf16.mxu0 0
        %521 = vmatpush2.bf16.msra.mxu0 0
        %522 = vmatprep.subr.bf16.mxu0 0
        %523 = vmatpush2.bf16.msra.mxu0 0
        %524 = vmatprep.subr.bf16.mxu0 0
        %525 = vmatpush2.bf16.msra.mxu0 0
        %526 = vmatprep.subr.bf16.mxu0 0
        %527 = vmatpush2.bf16.msra.mxu0 0
        %528 = vmatprep.mubr.bf16.mxu0 0
        %529 = vmatmul.mubr.bf16.gmra.mxu0 %v490
        %v530 = vpop.f32.mrf.mxu0
        %v531 = vadd.f32 0.0, %v530
        %v532 = vpop.f32.mrf.mxu0
        %v533 = vpop.f32.mrf.mxu0
        %v534 = vpop.f32.mrf.mxu0
        %535 = vdwg.mxu0
        %v537 = vsel %vm488, %v481, 0
        %v540 = vsel %vm492, %v479, 0
        %542 = vmatprep.subr.bf16.mxu0 0
        %543 = vmatpush1.bf16.msra.mxu0 0
        %544 = vmatprep.subr.bf16.mxu0 0
        %545 = vmatpush1.bf16.msra.mxu0 0
        %546 = vmatprep.subr.bf16.mxu0 0
        %547 = vmatpush1.bf16.msra.mxu0 0
        %548 = vmatprep.subr.bf16.mxu0 0
        %549 = vmatpush1.bf16.msra.mxu0 0
        %550 = vmatprep.subr.bf16.mxu0 0
        %551 = vmatpush1.bf16.msra.mxu0 0
        %552 = vmatprep.subr.bf16.mxu0 0
        %553 = vmatpush1.bf16.msra.mxu0 0
        %554 = vmatprep.subr.bf16.mxu0 0
        %555 = vmatpush1.bf16.msra.mxu0 0
        %556 = vmatprep.subr.bf16.mxu0 0
        %557 = vmatpush1.bf16.msra.mxu0 %v540
        %558 = vmatprep.subr.bf16.mxu0 0
        %559 = vmatpush2.bf16.msra.mxu0 0
        %560 = vmatprep.subr.bf16.mxu0 0
        %561 = vmatpush2.bf16.msra.mxu0 0
        %562 = vmatprep.subr.bf16.mxu0 0
        %563 = vmatpush2.bf16.msra.mxu0 0
        %564 = vmatprep.subr.bf16.mxu0 0
        %565 = vmatpush2.bf16.msra.mxu0 0
        %566 = vmatprep.subr.bf16.mxu0 0
        %567 = vmatpush2.bf16.msra.mxu0 0
        %568 = vmatprep.subr.bf16.mxu0 0
        %569 = vmatpush2.bf16.msra.mxu0 0
        %570 = vmatprep.subr.bf16.mxu0 0
        %571 = vmatpush2.bf16.msra.mxu0 0
        %572 = vmatprep.subr.bf16.mxu0 0
        %573 = vmatpush2.bf16.msra.mxu0 0
        %574 = vmatprep.mubr.bf16.mxu0 0
        %575 = vmatmul.mubr.bf16.gmra.mxu0 %v537
        %v576 = vpop.f32.mrf.mxu0
        %v577 = vadd.f32 %v531, %v576
        %v578 = vpop.f32.mrf.mxu0
        %v579 = vpop.f32.mrf.mxu0
        %v580 = vpop.f32.mrf.mxu0
        %581 = vdwg.mxu0
        %s582 = scalar_lea.vmem %s3, 8
        %v583 = vld [vmem:[%s582] sm:$0xf]
        %584 = vrot.lane.b32.xlu0 %v484, 122
        %v585 = vpop.permute.xlu0 %584
        %v587 = vsel %vm488, %v583, 0
        %v590 = vsel %vm492, %v585, 0
        %592 = vmatprep.subr.bf16.mxu0 0
        %593 = vmatpush1.bf16.msra.mxu0 0
        %594 = vmatprep.subr.bf16.mxu0 0
        %595 = vmatpush1.bf16.msra.mxu0 0
        %596 = vmatprep.subr.bf16.mxu0 0
        %597 = vmatpush1.bf16.msra.mxu0 0
        %598 = vmatprep.subr.bf16.mxu0 0
        %599 = vmatpush1.bf16.msra.mxu0 0
        %600 = vmatprep.subr.bf16.mxu0 0
        %601 = vmatpush1.bf16.msra.mxu0 0
        %602 = vmatprep.subr.bf16.mxu0 0
        %603 = vmatpush1.bf16.msra.mxu0 0
        %604 = vmatprep.subr.bf16.mxu0 0
        %605 = vmatpush1.bf16.msra.mxu0 0
        %606 = vmatprep.subr.bf16.mxu0 0
        %607 = vmatpush1.bf16.msra.mxu0 %v590
        %608 = vmatprep.subr.bf16.mxu0 0
        %609 = vmatpush2.bf16.msra.mxu0 0
        %610 = vmatprep.subr.bf16.mxu0 0
        %611 = vmatpush2.bf16.msra.mxu0 0
        %612 = vmatprep.subr.bf16.mxu0 0
        %613 = vmatpush2.bf16.msra.mxu0 0
        %614 = vmatprep.subr.bf16.mxu0 0
        %615 = vmatpush2.bf16.msra.mxu0 0
        %616 = vmatprep.subr.bf16.mxu0 0
        %617 = vmatpush2.bf16.msra.mxu0 0
        %618 = vmatprep.subr.bf16.mxu0 0
        %619 = vmatpush2.bf16.msra.mxu0 0
        %620 = vmatprep.subr.bf16.mxu0 0
        %621 = vmatpush2.bf16.msra.mxu0 0
        %622 = vmatprep.subr.bf16.mxu0 0
        %623 = vmatpush2.bf16.msra.mxu0 0
        %624 = vmatprep.mubr.bf16.mxu0 0
        %625 = vmatmul.mubr.bf16.gmra.mxu0 %v587
        %v626 = vpop.f32.mrf.mxu0
        %v627 = vadd.f32 0.0, %v626
        %v628 = vpop.f32.mrf.mxu0
        %v629 = vpop.f32.mrf.mxu0
        %v630 = vpop.f32.mrf.mxu0
        %631 = vdwg.mxu0
        %v632 = vadd.f32 %v577, %v627
        %s633 = scalar_lea.vmem %s1, 8
        %v634 = vld [vmem:[%s633] sm:$0xff]
        %636 = vset.pattern.permute.xlu0 0
        %637 = vperm.xlu0 %636, %v634
        %v638 = vpop.permute.xlu0 %637
        %v640 = vadd.f32 %v632, %v638
        %v641 = vadd.f32 %v470, %v640
        %v642 = vmul.f32 %v640, 0.2
        %v643 = vmax.f32 %v640, %v642
        %645 = vrot.lane.b32.xlu0 %v643, 4
        %v646 = vpop.permute.xlu0 %645
        %648 = vst.msk [vmem:[#allocation2] sm:$0xff] %vm477, %v646
        %v649 = vpack.c.bf16 %v643, %v643
        %s650 = scalar_lea.vmem %s4, 4
        %v651 = vld [vmem:[%s650] sm:$0xf]
        %v652 = vld [vmem:[%s4] sm:$0xf]
        %v653 = vld [vmem:[#allocation2] sm:$0xff]
        %v654 = vpack.c.bf16 %v653, %v653
        %v656 = vsel %vm488, %v652, 0
        %v659 = vsel %vm492, %v654, 0
        %661 = vmatprep.subr.bf16.mxu0 0
        %662 = vmatpush1.bf16.msra.mxu0 0
        %663 = vmatprep.subr.bf16.mxu0 0
        %664 = vmatpush1.bf16.msra.mxu0 0
        %665 = vmatprep.subr.bf16.mxu0 0
        %666 = vmatpush1.bf16.msra.mxu0 0
        %667 = vmatprep.subr.bf16.mxu0 0
        %668 = vmatpush1.bf16.msra.mxu0 0
        %669 = vmatprep.subr.bf16.mxu0 0
        %670 = vmatpush1.bf16.msra.mxu0 0
        %671 = vmatprep.subr.bf16.mxu0 0
        %672 = vmatpush1.bf16.msra.mxu0 0
        %673 = vmatprep.subr.bf16.mxu0 0
        %674 = vmatpush1.bf16.msra.mxu0 0
        %675 = vmatprep.subr.bf16.mxu0 0
        %676 = vmatpush1.bf16.msra.mxu0 %v659
        %677 = vmatprep.subr.bf16.mxu0 0
        %678 = vmatpush2.bf16.msra.mxu0 0
        %679 = vmatprep.subr.bf16.mxu0 0
        %680 = vmatpush2.bf16.msra.mxu0 0
        %681 = vmatprep.subr.bf16.mxu0 0
        %682 = vmatpush2.bf16.msra.mxu0 0
        %683 = vmatprep.subr.bf16.mxu0 0
        %684 = vmatpush2.bf16.msra.mxu0 0
        %685 = vmatprep.subr.bf16.mxu0 0
        %686 = vmatpush2.bf16.msra.mxu0 0
        %687 = vmatprep.subr.bf16.mxu0 0
        %688 = vmatpush2.bf16.msra.mxu0 0
        %689 = vmatprep.subr.bf16.mxu0 0
        %690 = vmatpush2.bf16.msra.mxu0 0
        %691 = vmatprep.subr.bf16.mxu0 0
        %692 = vmatpush2.bf16.msra.mxu0 0
        %693 = vmatprep.mubr.bf16.mxu0 0
        %694 = vmatmul.mubr.bf16.gmra.mxu0 %v656
        %v695 = vpop.f32.mrf.mxu0
        %v696 = vadd.f32 0.0, %v695
        %v697 = vpop.f32.mrf.mxu0
        %v698 = vpop.f32.mrf.mxu0
        %v699 = vpop.f32.mrf.mxu0
        %700 = vdwg.mxu0
        %v702 = vsel %vm488, %v651, 0
        %v705 = vsel %vm492, %v649, 0
        %707 = vmatprep.subr.bf16.mxu0 0
        %708 = vmatpush1.bf16.msra.mxu0 0
        %709 = vmatprep.subr.bf16.mxu0 0
        %710 = vmatpush1.bf16.msra.mxu0 0
        %711 = vmatprep.subr.bf16.mxu0 0
        %712 = vmatpush1.bf16.msra.mxu0 0
        %713 = vmatprep.subr.bf16.mxu0 0
        %714 = vmatpush1.bf16.msra.mxu0 0
        %715 = vmatprep.subr.bf16.mxu0 0
        %716 = vmatpush1.bf16.msra.mxu0 0
        %717 = vmatprep.subr.bf16.mxu0 0
        %718 = vmatpush1.bf16.msra.mxu0 0
        %719 = vmatprep.subr.bf16.mxu0 0
        %720 = vmatpush1.bf16.msra.mxu0 0
        %721 = vmatprep.subr.bf16.mxu0 0
        %722 = vmatpush1.bf16.msra.mxu0 %v705
        %723 = vmatprep.subr.bf16.mxu0 0
        %724 = vmatpush2.bf16.msra.mxu0 0
        %725 = vmatprep.subr.bf16.mxu0 0
        %726 = vmatpush2.bf16.msra.mxu0 0
        %727 = vmatprep.subr.bf16.mxu0 0
        %728 = vmatpush2.bf16.msra.mxu0 0
        %729 = vmatprep.subr.bf16.mxu0 0
        %730 = vmatpush2.bf16.msra.mxu0 0
        %731 = vmatprep.subr.bf16.mxu0 0
        %732 = vmatpush2.bf16.msra.mxu0 0
        %733 = vmatprep.subr.bf16.mxu0 0
        %734 = vmatpush2.bf16.msra.mxu0 0
        %735 = vmatprep.subr.bf16.mxu0 0
        %736 = vmatpush2.bf16.msra.mxu0 0
        %737 = vmatprep.subr.bf16.mxu0 0
        %738 = vmatpush2.bf16.msra.mxu0 0
        %739 = vmatprep.mubr.bf16.mxu0 0
        %740 = vmatmul.mubr.bf16.gmra.mxu0 %v702
        %v741 = vpop.f32.mrf.mxu0
        %v742 = vadd.f32 %v696, %v741
        %v743 = vpop.f32.mrf.mxu0
        %v744 = vpop.f32.mrf.mxu0
        %v745 = vpop.f32.mrf.mxu0
        %746 = vdwg.mxu0
        %s747 = scalar_lea.vmem %s4, 8
        %v748 = vld [vmem:[%s747] sm:$0xf]
        %750 = vrot.lane.b32.xlu0 %v654, 120
        %v751 = vpop.permute.xlu0 %750
        %v753 = vsel %vm488, %v748, 0
        %v756 = vsel %vm492, %v751, 0
        %758 = vmatprep.subr.bf16.mxu0 0
        %759 = vmatpush1.bf16.msra.mxu0 0
        %760 = vmatprep.subr.bf16.mxu0 0
        %761 = vmatpush1.bf16.msra.mxu0 0
        %762 = vmatprep.subr.bf16.mxu0 0
        %763 = vmatpush1.bf16.msra.mxu0 0
        %764 = vmatprep.subr.bf16.mxu0 0
        %765 = vmatpush1.bf16.msra.mxu0 0
        %766 = vmatprep.subr.bf16.mxu0 0
        %767 = vmatpush1.bf16.msra.mxu0 0
        %768 = vmatprep.subr.bf16.mxu0 0
        %769 = vmatpush1.bf16.msra.mxu0 0
        %770 = vmatprep.subr.bf16.mxu0 0
        %771 = vmatpush1.bf16.msra.mxu0 0
        %772 = vmatprep.subr.bf16.mxu0 0
        %773 = vmatpush1.bf16.msra.mxu0 %v756
        %774 = vmatprep.subr.bf16.mxu0 0
        %775 = vmatpush2.bf16.msra.mxu0 0
        %776 = vmatprep.subr.bf16.mxu0 0
        %777 = vmatpush2.bf16.msra.mxu0 0
        %778 = vmatprep.subr.bf16.mxu0 0
        %779 = vmatpush2.bf16.msra.mxu0 0
        %780 = vmatprep.subr.bf16.mxu0 0
        %781 = vmatpush2.bf16.msra.mxu0 0
        %782 = vmatprep.subr.bf16.mxu0 0
        %783 = vmatpush2.bf16.msra.mxu0 0
        %784 = vmatprep.subr.bf16.mxu0 0
        %785 = vmatpush2.bf16.msra.mxu0 0
        %786 = vmatprep.subr.bf16.mxu0 0
        %787 = vmatpush2.bf16.msra.mxu0 0
        %788 = vmatprep.subr.bf16.mxu0 0
        %789 = vmatpush2.bf16.msra.mxu0 0
        %790 = vmatprep.mubr.bf16.mxu0 0
        %791 = vmatmul.mubr.bf16.gmra.mxu0 %v753
        %v792 = vpop.f32.mrf.mxu0
        %v793 = vadd.f32 0.0, %v792
        %v794 = vpop.f32.mrf.mxu0
        %v795 = vpop.f32.mrf.mxu0
        %v796 = vpop.f32.mrf.mxu0
        %797 = vdwg.mxu0
        %v798 = vadd.f32 %v742, %v793
        %s799 = scalar_lea.vmem %s1, 16
        %v800 = vld [vmem:[%s799] sm:$0xff]
        %802 = vset.pattern.permute.xlu0 0
        %803 = vperm.xlu0 %802, %v800
        %v804 = vpop.permute.xlu0 %803
        %v806 = vadd.f32 %v798, %v804
        %v807 = vadd.f32 %v641, %v806
        %v808 = vmul.f32 %v807, 0.2
        %v809 = vmax.f32 %v807, %v808
        %vm810 = vcmask 130048
        %811 = vst.msk [vmem:[%s242] sm:$0xff] %vm810, %v809
        %s812 = sand.u32 %s159, 1
        %s813 = scalar_lea.sflag [#allocation4], %s812
        %s814 = sand.u32 %s159, 1
        %s815 = smul.addr %s814, 8
        %s816 = scalar_lea.vmem [#allocation3], %s815
        // Predicated region
        $region45: #{tpu_custom_call.1} parent=43 // pred_check
          %p817 = pneg %p169
        $region46: #{tpu_custom_call.1} parent=43 // pred_check_branch
          %819 = sbr.rel (%p817) target = $region48
        $region47: #{tpu_custom_call.1} parent=43 // pred_region
          %s821 = ssub.s32 128, 128
          %822 = vsyncadd %s813, %s821
          %s823 = smul.addr %s20, 128
          %s824 = scalar_lea.hbm %s6, %s823
          %s826 = sshll.u32 %s816, 4
          %s827 = int_to_ptr.vmem [resolvable:$true] %s826
          %829 = dma.vmem_to_hbm [thread:$0]  %s827, 128, %s824, %s813
        $region48: #{tpu_custom_call.1} parent=43 // pred_fallthru
          _
      $region44: #{tpu_custom_call.1} parent=5 // pred_fallthru
        _
      %p830 = scmp.le.s32.totalorder 2, %s15
      // Predicated region
      $region49: #{tpu_custom_call.1} parent=5 // pred_check
        %p831 = pneg %p830
      $region50: #{tpu_custom_call.1} parent=5 // pred_check_branch
        %833 = sbr.rel (%p831) target = $region52
      $region51: #{tpu_custom_call.1} parent=5 // pred_region
        %s834 = ssub.s32 %s15, 2
        // Predicated region
        $region53: #{tpu_custom_call.1} parent=51 // pred_check
          %p835 = pneg %p175
        $region54: #{tpu_custom_call.1} parent=51 // pred_check_branch
          %837 = sbr.rel (%p835) target = $region56
        $region55: #{tpu_custom_call.1} parent=51 // pred_region
          %s838 = sand.u32 %s160, 1
          %s839 = scalar_lea.sflag [#allocation4], %s838
          %s840 = sand.u32 %s160, 1
          %s841 = smul.addr %s840, 8
          %s842 = scalar_lea.vmem [#allocation3], %s841
          %843 = dma.done %s839, 128
        $region56: #{tpu_custom_call.1} parent=51 // pred_fallthru
          _
      $region52: #{tpu_custom_call.1} parent=5 // pred_fallthru
        _
    $region6: #{tpu_custom_call.1} parent=1 // loop_footer
      %s19 = sadd.s32 1, %s15
    $region7: #{tpu_custom_call.1} parent=1 // loop_footer_branch
      %14 = sbr.rel target = $region3
    $region8: #{tpu_custom_call.1} parent=1 // loop_exit
      _
    %844 = vsyncpa [#allocation4], 1
    %s845 = scalar_lea.sflag [#allocation4], 1
    %846 = vsyncpa %s845, 1

</llo_original>
